<compile_context>
chip_gen: v5e
topology: v5e:2x2
jax: 0.10.0
libtpu: 0.0.40
codegen_flags: <defaults>
</compile_context>

<pallas_src>
import functools
import math

import jax
import jax.numpy as jnp
from jax.experimental import pallas as pl
from jax.experimental.pallas import tpu as pltpu

LANE = 128


def _round_up(x: int, m: int) -> int:
    return ((x + m - 1) // m) * m


# ---------------------------------------------------------------------------
# One-time hardware / capability probes (cached; never wrap the real kernel).
# ---------------------------------------------------------------------------
@functools.lru_cache(maxsize=None)
def _vmem_capacity_bytes() -> int:
    """Physical VMEM per TensorCore; conservative 64 MiB (v7x) if unknown."""
    try:
        cap = getattr(pltpu.get_tpu_info(), "vmem_capacity_bytes", None)
        if cap:
            return int(cap)
    except Exception:  # hardware query only; falling back is safe
        pass
    return 64 * 1024 * 1024


@functools.lru_cache(maxsize=None)
def _pipeline_mode_supported() -> bool:
    """Probe pl.Buffered(1)/(3) once with a tiny copy kernel."""
    if not hasattr(pl, "Buffered"):
        return False
    try:
        def _copy(a_ref, b_ref, o_ref):
            o_ref[...] = a_ref[...] + b_ref[...]

        a = jnp.zeros((32, LANE), jnp.float32)
        b = jnp.zeros((8, LANE), jnp.float32)
        out = pl.pallas_call(
            _copy,
            out_shape=jax.ShapeDtypeStruct((32, LANE), jnp.float32),
            grid=(4,),
            in_specs=[
                pl.BlockSpec((8, LANE), lambda i: (i, 0),
                             pipeline_mode=pl.Buffered(3)),   # streamed operand
                pl.BlockSpec((8, LANE), lambda i: (0, 0),
                             pipeline_mode=pl.Buffered(1)),   # resident operand
            ],
            out_specs=pl.BlockSpec((8, LANE), lambda i: (i, 0)),
        )(a, b)
        jax.block_until_ready(out)
        return True
    except Exception:  # capability probe: failure just disables the feature
        return False


# ---------------------------------------------------------------------------
# Kernels
# ---------------------------------------------------------------------------
def _mlp_resident_kernel(x_ref, w1_ref, b1_ref, w2_ref, b2_ref, o_ref):
    # fc1 on the MXU, f32 accumulation; bias + ReLU epilogue in f32
    # (safe on v5e's non-bf16 VPU).
    h = jnp.dot(x_ref[...], w1_ref[...], preferred_element_type=jnp.float32)
    h = jnp.maximum(h + b1_ref[...], 0.0)
    # Dropout(p=0.0) is the identity (module default / eval mode).
    # TODO(synk): nonzero dropout would need pltpu.prng_seed + prng_random_bits
    #             masking with 1/(1-p) rescaling.
    y = jnp.dot(h.astype(w2_ref.dtype), w2_ref[...],
                preferred_element_type=jnp.float32)
    o_ref[...] = (y + b2_ref[...]).astype(o_ref.dtype)


def _mlp_htiled_kernel(x_ref, w1_ref, b1_ref, w2_ref, b2_ref, o_ref, acc_ref):
    # Hidden dim tiled on grid axis 1 (reduction for fc2); f32 accumulator.
    j = pl.program_id(1)

    @pl.when(j == 0)
    def _():
        acc_ref[...] = jnp.zeros_like(acc_ref)

    h = jnp.dot(x_ref[...], w1_ref[...], preferred_element_type=jnp.float32)
    h = jnp.maximum(h + b1_ref[...], 0.0)   # bias+ReLU are per-hidden-unit: tiling-safe
    acc_ref[...] += jnp.dot(h.astype(w2_ref.dtype), w2_ref[...],
                            preferred_element_type=jnp.float32)

    @pl.when(j == pl.num_programs(1) - 1)
    def _():
        o_ref[...] = (acc_ref[...] + b2_ref[...]).astype(o_ref.dtype)


# ---------------------------------------------------------------------------
# Parameter preparation (done ONCE, hoisted out of the per-call path).
# ---------------------------------------------------------------------------
def prepare_mlp_decoder_params(w1, b1, w2, b2, *, compute_dtype=jnp.bfloat16):
    """Pad weights to lane multiples and cast to compute_dtype once."""
    n_input, n_hidden = w1.shape
    n_output = w2.shape[1]
    Kp = _round_up(n_input, LANE)
    Hp = _round_up(n_hidden, LANE)
    Op = _round_up(n_output, LANE)
    w1_p = jnp.zeros((Kp, Hp), compute_dtype).at[:n_input, :n_hidden].set(
        w1.astype(compute_dtype))
    w2_p = jnp.zeros((Hp, Op), compute_dtype).at[:n_hidden, :n_output].set(
        w2.astype(compute_dtype))
    # Biases stay f32 for the epilogue.
    b1_p = jnp.zeros((1, Hp), jnp.float32).at[0, :n_hidden].set(
        b1.astype(jnp.float32))
    b2_p = jnp.zeros((1, Op), jnp.float32).at[0, :n_output].set(
        b2.astype(jnp.float32))
    dims = dict(n_input=n_input, n_hidden=n_hidden, n_output=n_output,
                Kp=Kp, Hp=Hp, Op=Op, compute_dtype=compute_dtype)
    return (w1_p, b1_p, w2_p, b2_p), dims


# ---------------------------------------------------------------------------
# Per-call apply
# ---------------------------------------------------------------------------
def mlp_decoder_apply(params, dims, x, *, tm=None, out_dtype=None,
                      vmem_budget_bytes=None):
    w1_p, b1_p, w2_p, b2_p = params
    n_input = dims["n_input"]
    n_output = dims["n_output"]
    Kp, Hp, Op = dims["Kp"], dims["Hp"], dims["Op"]
    cdt = dims["compute_dtype"]
    cdt_size = jnp.dtype(cdt).itemsize

    N, xin = x.shape
    assert xin == n_input, f"x has {xin} features, expected {n_input}"
    out_dtype = x.dtype if out_dtype is None else out_dtype
    out_size = jnp.dtype(out_dtype).itemsize

    vmem_cap = _vmem_capacity_bytes()
    if vmem_budget_bytes is None:
        vmem_budget_bytes = int(0.70 * vmem_cap)          # headroom for pipeline
    vmem_limit = int(0.78 * vmem_cap)                      # ~100 MiB v5e/v6e, ~50 MiB v7x
    pm_ok = _pipeline_mode_supported()

    # ---- row-tile (tm) selection: generation- and batch-aware -------------
    sub = 16 if cdt_size == 2 else 8                       # sublane packing multiple
    if tm is None:
        tm = 256 if vmem_cap > 96 * 1024 * 1024 else 128   # v5e/v6e vs v7x default
    tm = max(sub, min(tm, _round_up(N, sub)))              # don't over-pad small N
    Np = _round_up(N, tm)
    # Prefer >= 2 row tiles so the "parallel" axis can shard across 2 TCs (v7x).
    if Np // tm == 1 and tm % (2 * sub) == 0:
        tm //= 2
    grid_rows = Np // tm

    # ---- pad x only when needed (skip the copy on aligned shapes) ---------
    if Np == N and Kp == n_input:
        x_p = x if x.dtype == cdt else x.astype(cdt)
    else:
        x_p = jnp.zeros((Np, Kp), cdt).at[:N, :n_input].set(x.astype(cdt))

    # ---- pipeline modes ----------------------------------------------------
    res_mode = dict(pipeline_mode=pl.Buffered(1)) if pm_ok else {}
    x_mode = dict(pipeline_mode=pl.Buffered(3)) if (pm_ok and grid_rows >= 3) else {}
    x_bufs = 3 if (pm_ok and grid_rows >= 3) else 2
    w_bufs = 1 if pm_ok else 2

    cost = pl.CostEstimate(
        flops=2 * Np * Kp * Hp + 2 * Np * Hp * Op,
        transcendentals=0,
        bytes_accessed=(Np * Kp * cdt_size + Kp * Hp * cdt_size
                        + Hp * Op * cdt_size + (Hp + Op) * 4
                        + Np * Op * out_size))
    compiler_kw = dict(vmem_limit_bytes=vmem_limit)

    # ---- VMEM budget: resident weights vs. H-tiled fallback ----------------
    def _resident_vmem():
        weights = w_bufs * ((Kp * Hp + Hp * Op) * cdt_size + (Hp + Op) * 4)
        stream = x_bufs * tm * Kp * cdt_size + 2 * tm * Op * out_size
        interm = tm * Hp * 4 + tm * Op * 4      # f32 fc1 activations + fc2 result
        return weights + stream + interm

    if _resident_vmem() <= vmem_budget_bytes:
        grid_spec = pltpu.PrefetchScalarGridSpec(
            num_scalar_prefetch=0,
            grid=(grid_rows,),
            in_specs=[
                pl.BlockSpec((tm, Kp), lambda i: (i, 0), **x_mode),    # x row tile
                pl.BlockSpec((Kp, Hp), lambda i: (0, 0), **res_mode),  # W1 resident
                pl.BlockSpec((1, Hp), lambda i: (0, 0), **res_mode),   # b1
                pl.BlockSpec((Hp, Op), lambda i: (0, 0), **res_mode),  # W2 resident
                pl.BlockSpec((1, Op), lambda i: (0, 0), **res_mode),   # b2
            ],
            out_specs=pl.BlockSpec((tm, Op), lambda i: (i, 0)),
        )
        out_p = pl.pallas_call(
            _mlp_resident_kernel,
            out_shape=jax.ShapeDtypeStruct((Np, Op), out_dtype),
            grid_spec=grid_spec,
            compiler_params=pltpu.CompilerParams(
                dimension_semantics=("parallel",), **compiler_kw),
            cost_estimate=cost,
        )(x_p, w1_p, b1_p, w2_p, b2_p)
    else:
        # H-tiled fallback (weights too large to keep fully resident, e.g. v7x).
        def _htiled_vmem(th):
            weights = 2 * ((Kp * th + th * Op) * cdt_size + th * 4) + Op * 4
            stream = x_bufs * tm * Kp * cdt_size + 2 * tm * Op * out_size
            interm = tm * th * 4 + tm * Op * 4  # f32 fc1 slice + acc scratch
            return weights + stream + interm

        th = LANE
        cand = Hp
        while cand >= LANE:
            if Hp % cand == 0 and _htiled_vmem(cand) <= vmem_budget_bytes:
                th = cand
                break
            cand -= LANE

        grid_spec = pltpu.PrefetchScalarGridSpec(
            num_scalar_prefetch=0,
            grid=(grid_rows, Hp // th),
            in_specs=[
                pl.BlockSpec((tm, Kp), lambda i, j: (i, 0), **x_mode),
                pl.BlockSpec((Kp, th), lambda i, j: (0, j)),           # W1 H-slice
                pl.BlockSpec((1, th), lambda i, j: (0, j)),            # b1 H-slice
                pl.BlockSpec((th, Op), lambda i, j: (j, 0)),           # W2 H-slice
                pl.BlockSpec((1, Op), lambda i, j: (0, 0), **res_mode),
            ],
            out_specs=pl.BlockSpec((tm, Op), lambda i, j: (i, 0)),
            scratch_shapes=[pltpu.VMEM((tm, Op), jnp.float32)],
        )
        out_p = pl.pallas_call(
            _mlp_htiled_kernel,
            out_shape=jax.ShapeDtypeStruct((Np, Op), out_dtype),
            grid_spec=grid_spec,
            compiler_params=pltpu.CompilerParams(
                dimension_semantics=("parallel", "arbitrary"), **compiler_kw),
            cost_estimate=cost,
        )(x_p, w1_p, b1_p, w2_p, b2_p)

    if Np == N and Op == n_output:
        return out_p
    return out_p[:N, :n_output]


def mlp_decoder(x, w1, b1, w2, b2, *, compute_dtype=jnp.bfloat16, **kwargs):
    """One-shot convenience wrapper (prefer prepare_... + apply for reuse)."""
    params, dims = prepare_mlp_decoder_params(
        w1, b1, w2, b2, compute_dtype=compute_dtype)
    return mlp_decoder_apply(params, dims, x, **kwargs)


# ---------------------------------------------------------------------------
# Reference + test
# ---------------------------------------------------------------------------
def _init_linear(key, fan_in, fan_out, dtype=jnp.float32):
    # torch.nn.Linear default init analogue; stored as (in, out).
    kw, kb = jax.random.split(key)
    bound = 1.0 / math.sqrt(fan_in)
    w = jax.random.uniform(kw, (fan_in, fan_out), dtype, -bound, bound)
    b = jax.random.uniform(kb, (fan_out,), dtype, -bound, bound)
    return w, b


def mlp_decoder_ref(x, w1, b1, w2, b2):
    h = jnp.maximum(x @ w1 + b1, 0.0)
    return h @ w2 + b2


if __name__ == "__main__":
    key = jax.random.PRNGKey(0)
    k_x, k_fc1, k_fc2, k_fc1b, k_fc2b = jax.random.split(key, 5)

    N, n_input, n_hidden, n_output = 16, 32, 64, 16
    x = jax.random.normal(k_x, (N, n_input), jnp.float32)
    w1, b1 = _init_linear(k_fc1, n_input, n_hidden)
    w2, b2 = _init_linear(k_fc2, n_hidden, n_output)
    ref = mlp_decoder_ref(x, w1, b1, w2, b2)

    # 1) bf16 operands, f32 accumulation; params prepared once, applied twice.
    params_bf16, dims_bf16 = prepare_mlp_decoder_params(
        w1, b1, w2, b2, compute_dtype=jnp.bfloat16)
    out = mlp_decoder_apply(params_bf16, dims_bf16, x)
    out = jax.block_until_ready(out)
    assert out.shape == (N, n_output)
    assert jnp.allclose(out, ref, atol=5e-2, rtol=5e-2), \
        "bf16 kernel mismatch vs f32 reference"
    out2 = jax.block_until_ready(mlp_decoder_apply(params_bf16, dims_bf16, x))
    assert jnp.allclose(out2, out), "re-applied params mismatch"

    # 2) full-f32 path for a tight correctness check (resident-weight kernel).
    params_f32, dims_f32 = prepare_mlp_decoder_params(
        w1, b1, w2, b2, compute_dtype=jnp.float32)
    out_f32 = jax.block_until_ready(mlp_decoder_apply(params_f32, dims_f32, x))
    assert jnp.allclose(out_f32, ref, atol=2e-3, rtol=2e-3), \
        "f32 kernel mismatch vs reference"

    # 3) H-tiled fallback path (forced via vmem_budget_bytes=0) with a hidden
    #    dim that spans multiple 128-lane tiles, to exercise the reduction.
    n_hidden_big = 320
    w1b, b1b = _init_linear(k_fc1b, n_input, n_hidden_big)
    w2b, b2b = _init_linear(k_fc2b, n_hidden_big, n_output)
    ref_big = mlp_decoder_ref(x, w1b, b1b, w2b, b2b)
    params_big, dims_big = prepare_mlp_decoder_params(
        w1b, b1b, w2b, b2b, compute_dtype=jnp.float32)
    out_big = jax.block_until_ready(
        mlp_decoder_apply(params_big, dims_big, x, vmem_budget_bytes=0))
    assert jnp.allclose(out_big, ref_big, atol=2e-3, rtol=2e-3), \
        "H-tiled kernel mismatch vs reference"

    print("KERNEL_OK")
</pallas_src>

<mosaic_0001>
module attributes {stable_mosaic.version = 11 : i64} {
  func.func @_mlp_resident_kernel(%arg0: i32, %arg1: memref<16x128xbf16, #tpu.memory_space<vmem>>, %arg2: memref<128x128xbf16, #tpu.memory_space<vmem>>, %arg3: memref<1x128xf32, #tpu.memory_space<vmem>>, %arg4: memref<128x128xbf16, #tpu.memory_space<vmem>>, %arg5: memref<1x128xf32, #tpu.memory_space<vmem>>, %arg6: memref<16x128xf32, #tpu.memory_space<vmem>>) attributes {dimension_semantics = [#tpu.dimension_semantics<parallel>], iteration_bounds = array<i64: 1>, scalar_prefetch = 0 : i64, scratch_operands = 0 : i64, tpu.core_type = #tpu.core_type<tc>, window_params = [{transform_indices = @transform_0, window_bounds = array<i64: 16, 128>}, {pipeline_mode = #tpu.pipeline_mode<synchronous>, transform_indices = @transform_1, window_bounds = array<i64: 128, 128>}, {pipeline_mode = #tpu.pipeline_mode<synchronous>, transform_indices = @transform_2, window_bounds = array<i64: 1, 128>}, {pipeline_mode = #tpu.pipeline_mode<synchronous>, transform_indices = @transform_3, window_bounds = array<i64: 128, 128>}, {pipeline_mode = #tpu.pipeline_mode<synchronous>, transform_indices = @transform_4, window_bounds = array<i64: 1, 128>}, {transform_indices = @transform_5, window_bounds = array<i64: 16, 128>}]} {
    %c0 = arith.constant 0 : index
    %c0_0 = arith.constant 0 : index
    %0 = vector.load %arg1[%c0, %c0_0] : memref<16x128xbf16, #tpu.memory_space<vmem>>, vector<16x128xbf16>
    %c0_1 = arith.constant 0 : index
    %c0_2 = arith.constant 0 : index
    %1 = vector.load %arg2[%c0_1, %c0_2] : memref<128x128xbf16, #tpu.memory_space<vmem>>, vector<128x128xbf16>
    %cst = arith.constant dense<0.000000e+00> : vector<16x128xf32>
    %2 = tpu.matmul %0, %1, %cst {dimension_numbers = #tpu.dot_dimension_numbers<[1], [0], [0], [1], [0, 0, 1, 1], [], []>} : vector<16x128xbf16>, vector<128x128xbf16>, vector<16x128xf32> -> vector<16x128xf32>
    %c0_3 = arith.constant 0 : index
    %c0_4 = arith.constant 0 : index
    %3 = vector.load %arg3[%c0_3, %c0_4] : memref<1x128xf32, #tpu.memory_space<vmem>>, vector<1x128xf32>
    %4 = vector.broadcast %3 : vector<1x128xf32> to vector<16x128xf32>
    %5 = arith.addf %2, %4 : vector<16x128xf32>
    %cst_5 = arith.constant 0.000000e+00 : f32
    %6 = vector.broadcast %cst_5 : f32 to vector<16x128xf32>
    %7 = arith.maximumf %5, %6 : vector<16x128xf32>
    %8 = arith.truncf %7 : vector<16x128xf32> to vector<16x128xbf16>
    %c0_6 = arith.constant 0 : index
    %c0_7 = arith.constant 0 : index
    %9 = vector.load %arg4[%c0_6, %c0_7] : memref<128x128xbf16, #tpu.memory_space<vmem>>, vector<128x128xbf16>
    %cst_8 = arith.constant dense<0.000000e+00> : vector<16x128xf32>
    %10 = tpu.matmul %8, %9, %cst_8 {dimension_numbers = #tpu.dot_dimension_numbers<[1], [0], [0], [1], [0, 0, 1, 1], [], []>} : vector<16x128xbf16>, vector<128x128xbf16>, vector<16x128xf32> -> vector<16x128xf32>
    %c0_9 = arith.constant 0 : index
    %c0_10 = arith.constant 0 : index
    %11 = vector.load %arg5[%c0_9, %c0_10] : memref<1x128xf32, #tpu.memory_space<vmem>>, vector<1x128xf32>
    %12 = vector.broadcast %11 : vector<1x128xf32> to vector<16x128xf32>
    %13 = arith.addf %10, %12 : vector<16x128xf32>
    %c0_11 = arith.constant 0 : index
    %c0_12 = arith.constant 0 : index
    %14 = vector.load %arg6[%c0_11, %c0_12] : memref<16x128xf32, #tpu.memory_space<vmem>>, vector<16x128xf32>
    tpu.vector_store %arg6[%c0_11, %c0_12], %13 {strides = array<i32>} : memref<16x128xf32, #tpu.memory_space<vmem>>, vector<16x128xf32>,
    return
  }
  func.func @transform_0(%arg0: i32) -> (i32, i32) {
    %c0_i32 = arith.constant 0 : i32
    %c0_i32_0 = arith.constant 0 : i32
    return %arg0, %c0_i32 : i32, i32
  }
  func.func @transform_1(%arg0: i32) -> (i32, i32) {
    %c0_i32 = arith.constant 0 : i32
    %c0_i32_0 = arith.constant 0 : i32
    %c0_i32_1 = arith.constant 0 : i32
    return %c0_i32, %c0_i32_0 : i32, i32
  }
  func.func @transform_2(%arg0: i32) -> (i32, i32) {
    %c0_i32 = arith.constant 0 : i32
    %c0_i32_0 = arith.constant 0 : i32
    %c0_i32_1 = arith.constant 0 : i32
    return %c0_i32, %c0_i32_0 : i32, i32
  }
  func.func @transform_3(%arg0: i32) -> (i32, i32) {
    %c0_i32 = arith.constant 0 : i32
    %c0_i32_0 = arith.constant 0 : i32
    %c0_i32_1 = arith.constant 0 : i32
    return %c0_i32, %c0_i32_0 : i32, i32
  }
  func.func @transform_4(%arg0: i32) -> (i32, i32) {
    %c0_i32 = arith.constant 0 : i32
    %c0_i32_0 = arith.constant 0 : i32
    %c0_i32_1 = arith.constant 0 : i32
    return %c0_i32, %c0_i32_0 : i32, i32
  }
  func.func @transform_5(%arg0: i32) -> (i32, i32) {
    %c0_i32 = arith.constant 0 : i32
    %c0_i32_0 = arith.constant 0 : i32
    return %arg0, %c0_i32 : i32, i32
  }
}

</mosaic_0001>

<llo_original>
// kernel: tpu_custom_call.1
$region0: #{tpu_custom_call.1}
  #allocation0 [shape = 'u32[]', space=smem, size = 0x4, offset = 0x4, fixed_abs, tag = 'smem constant byte address 0x4 - core index']
  #allocation1 [shape = 'u32[72,128]{1,0:T(1,128)}', space=vmem, size = 0x9000, scoped, tag = 'internal scratch']
  %s0 = inlined_call_operand.hbm [shape: bf16[16,128], index: 0, kind: input, shape index: {}]
  %s1 = inlined_call_operand.hbm [shape: bf16[128,128], index: 1, kind: input, shape index: {}]
  %s2 = inlined_call_operand.vmem [shape: f32[1,128], index: 2, kind: input, shape index: {}]
  %s3 = inlined_call_operand.hbm [shape: bf16[128,128], index: 3, kind: input, shape index: {}]
  %s4 = inlined_call_operand.vmem [shape: f32[1,128], index: 4, kind: input, shape index: {}]
  %s5 = inlined_call_operand.hbm [shape: f32[16,128], index: 5, kind: output, shape index: {}]
  %s6 = sld [smem:[#allocation0]]
  $region42: #{tpu_custom_call.1} parent=0
    _
  %s8 = ssub.s32 1, %s6
  %s9 = scalar_select 0, %s8, %s6
  $region1: #{tpu_custom_call.1} parent=0
    #allocation2 [shape = 'u8[4096]{0}', space=vmem, size = 0x1000, scoped, tag = 'input window, operand 0, single buffered']
    #allocation3 [shape = 's32[1]{0}', space=sflag, size = 0x4, scoped, tag = 'scoped memory for tpu_custom_call.1']
    #allocation4 [shape = 's32[1]{0}', space=sflag, size = 0x4, scoped, tag = 'scoped memory for tpu_custom_call.1']
    #allocation5 [shape = 'u8[32768]{0}', space=vmem, size = 0x8000, scoped, tag = 'input window, operand 1, single buffered']
    #allocation6 [shape = 's32[1]{0}', space=sflag, size = 0x4, scoped, tag = 'scoped memory for tpu_custom_call.1']
    #allocation7 [shape = 'u8[32768]{0}', space=vmem, size = 0x8000, scoped, tag = 'input window, operand 3, single buffered']
    #allocation8 [shape = 'u8[8192]{0}', space=vmem, size = 0x2000, scoped, tag = 'output window, operand 0, single buffered']
    %10 = vsyncpa [#allocation3], 0
    %11 = vsyncpa [#allocation6], 0
    %12 = vsyncpa [#allocation4], 0
    // Predicated region
    $region2: #{tpu_custom_call.1} parent=1 // pred_check
      _
    $region3: #{tpu_custom_call.1} parent=1 // pred_check_branch
      %14 = sbr.rel (0) target = $region5
    $region4: #{tpu_custom_call.1} parent=1 // pred_region
      %16 = vsyncadd [#allocation3], 0
      %s17 = sshll.u32 %s0, 4
      %s18 = int_to_ptr.hbm [resolvable:$true] %s17
      %s19 = sshll.u32 [#allocation2], 4
      %s20 = int_to_ptr.vmem [resolvable:$true] %s19
      %25 = dma.hbm_to_vmem [thread:$0]  %s18, 128, %s20, [#allocation3], 64, 64, 4
    $region5: #{tpu_custom_call.1} parent=1 // pred_fallthru
      _
    // Predicated region
    $region6: #{tpu_custom_call.1} parent=1 // pred_check
      _
    $region7: #{tpu_custom_call.1} parent=1 // pred_check_branch
      %27 = sbr.rel (0) target = $region9
    $region8: #{tpu_custom_call.1} parent=1 // pred_region
      %29 = vsyncadd [#allocation6], 0
      %s30 = sshll.u32 %s1, 4
      %s31 = int_to_ptr.hbm [resolvable:$true] %s30
      %s32 = sshll.u32 [#allocation5], 4
      %s33 = int_to_ptr.vmem [resolvable:$true] %s32
      %38 = dma.hbm_to_vmem [thread:$0]  %s31, 1024, %s33, [#allocation6], 64, 64, 4
    $region9: #{tpu_custom_call.1} parent=1 // pred_fallthru
      _
    // Predicated region
    $region10: #{tpu_custom_call.1} parent=1 // pred_check
      _
    $region11: #{tpu_custom_call.1} parent=1 // pred_check_branch
      %40 = sbr.rel (0) target = $region13
    $region12: #{tpu_custom_call.1} parent=1 // pred_region
      _
    $region13: #{tpu_custom_call.1} parent=1 // pred_fallthru
      _
    // Predicated region
    $region14: #{tpu_custom_call.1} parent=1 // pred_check
      _
    $region15: #{tpu_custom_call.1} parent=1 // pred_check_branch
      %42 = sbr.rel (0) target = $region17
    $region16: #{tpu_custom_call.1} parent=1 // pred_region
      %44 = vsyncadd [#allocation6], 0
      %s45 = sshll.u32 %s3, 4
      %s46 = int_to_ptr.hbm [resolvable:$true] %s45
      %s47 = sshll.u32 [#allocation7], 4
      %s48 = int_to_ptr.vmem [resolvable:$true] %s47
      %53 = dma.hbm_to_vmem [thread:$0]  %s46, 1024, %s48, [#allocation6], 64, 64, 4
    $region17: #{tpu_custom_call.1} parent=1 // pred_fallthru
      _
    // Predicated region
    $region18: #{tpu_custom_call.1} parent=1 // pred_check
      _
    $region19: #{tpu_custom_call.1} parent=1 // pred_check_branch
      %55 = sbr.rel (0) target = $region21
    $region20: #{tpu_custom_call.1} parent=1 // pred_region
      _
    $region21: #{tpu_custom_call.1} parent=1 // pred_fallthru
      _
    // Predicated region
    $region22: #{tpu_custom_call.1} parent=1 // pred_check
      _
    $region23: #{tpu_custom_call.1} parent=1 // pred_check_branch
      %57 = sbr.rel (0) target = $region25
    $region24: #{tpu_custom_call.1} parent=1 // pred_region
      %59 = dma.done [#allocation3], 128
    $region25: #{tpu_custom_call.1} parent=1 // pred_fallthru
      _
    // Predicated region
    $region26: #{tpu_custom_call.1} parent=1 // pred_check
      _
    $region27: #{tpu_custom_call.1} parent=1 // pred_check_branch
      %61 = sbr.rel (0) target = $region29
    $region28: #{tpu_custom_call.1} parent=1 // pred_region
      %63 = dma.done [#allocation6], 1024
    $region29: #{tpu_custom_call.1} parent=1 // pred_fallthru
      _
    // Predicated region
    $region30: #{tpu_custom_call.1} parent=1 // pred_check
      _
    $region31: #{tpu_custom_call.1} parent=1 // pred_check_branch
      %65 = sbr.rel (0) target = $region33
    $region32: #{tpu_custom_call.1} parent=1 // pred_region
      %67 = dma.done [#allocation6], 1024
    $region33: #{tpu_custom_call.1} parent=1 // pred_fallthru
      _
    %v68 = vld [vmem:[#allocation2] sm:$0xf]
    %v69 = vld [vmem:[#allocation2 + $0x4] sm:$0xf]
    %v70 = vld [vmem:[#allocation5] sm:$0xf]
    %v71 = vld [vmem:[#allocation5 + $0x4] sm:$0xf]
    %v72 = vld [vmem:[#allocation5 + $0x8] sm:$0xf]
    %v73 = vld [vmem:[#allocation5 + $0xc] sm:$0xf]
    %v74 = vld [vmem:[#allocation5 + $0x10] sm:$0xf]
    %v75 = vld [vmem:[#allocation5 + $0x14] sm:$0xf]
    %v76 = vld [vmem:[#allocation5 + $0x18] sm:$0xf]
    %v77 = vld [vmem:[#allocation5 + $0x1c] sm:$0xf]
    %v78 = vld [vmem:[#allocation5 + $0x20] sm:$0xf]
    %v79 = vld [vmem:[#allocation5 + $0x24] sm:$0xf]
    %v80 = vld [vmem:[#allocation5 + $0x28] sm:$0xf]
    %v81 = vld [vmem:[#allocation5 + $0x2c] sm:$0xf]
    %v82 = vld [vmem:[#allocation5 + $0x30] sm:$0xf]
    %v83 = vld [vmem:[#allocation5 + $0x34] sm:$0xf]
    %v84 = vld [vmem:[#allocation5 + $0x38] sm:$0xf]
    %v85 = vld [vmem:[#allocation5 + $0x3c] sm:$0xf]
    %v86 = vld [vmem:[%s2] sm:$0x1]
    %v88 = vperm.slane %v86, 0
    %v92 = vunpack.c.l.b16 %v68
    %v93 = vunpack.c.l.b16 %v69
    %v94 = vpack.c.b16 %v93, %v92
    %v112 = vunpack.c.l.b16 %v70
    %v113 = vunpack.c.l.b16 %v71
    %v114 = vunpack.c.l.b16 %v72
    %v115 = vunpack.c.l.b16 %v73
    %v116 = vunpack.c.l.b16 %v74
    %v117 = vunpack.c.l.b16 %v75
    %v118 = vunpack.c.l.b16 %v76
    %v119 = vunpack.c.l.b16 %v77
    %v120 = vunpack.c.l.b16 %v78
    %v121 = vunpack.c.l.b16 %v79
    %v122 = vunpack.c.l.b16 %v80
    %v123 = vunpack.c.l.b16 %v81
    %v124 = vunpack.c.l.b16 %v82
    %v125 = vunpack.c.l.b16 %v83
    %v126 = vunpack.c.l.b16 %v84
    %v127 = vunpack.c.l.b16 %v85
    %v128 = vpack.c.b16 %v113, %v112
    %v129 = vpack.c.b16 %v115, %v114
    %v130 = vpack.c.b16 %v117, %v116
    %v131 = vpack.c.b16 %v119, %v118
    %v132 = vpack.c.b16 %v121, %v120
    %v133 = vpack.c.b16 %v123, %v122
    %v134 = vpack.c.b16 %v125, %v124
    %v135 = vpack.c.b16 %v127, %v126
    %144 = vmatpush.bf16.msra.mxu0 %v135
    %145 = vmatpush.bf16.msra.mxu0 %v134
    %146 = vmatpush.bf16.msra.mxu0 %v133
    %147 = vmatpush.bf16.msra.mxu0 %v132
    %148 = vmatpush.bf16.msra.mxu0 %v131
    %149 = vmatpush.bf16.msra.mxu0 %v130
    %150 = vmatpush.bf16.msra.mxu0 %v129
    %151 = vmatpush.bf16.msra.mxu0 %v128
    %152 = vmatmul.bf16.gmra.mxu0 %v94
    %v153 = vpop.f32.mrf.mxu0
    %v154 = vadd.f32 %v88, %v153
    %v155 = vpop.f32.mrf.mxu0
    %v156 = vadd.f32 %v88, %v155
    %157 = vdwg.mxu0
    %v158 = vmax.f32 %v154, 0.0
    %v159 = vmax.f32 %v156, 0.0
    %v160 = vpack.c.bf16 %v159, %v158
    %v161 = vld [vmem:[#allocation7] sm:$0xf]
    %v162 = vld [vmem:[#allocation7 + $0x4] sm:$0xf]
    %v163 = vld [vmem:[#allocation7 + $0x8] sm:$0xf]
    %v164 = vld [vmem:[#allocation7 + $0xc] sm:$0xf]
    %v165 = vld [vmem:[#allocation7 + $0x10] sm:$0xf]
    %v166 = vld [vmem:[#allocation7 + $0x14] sm:$0xf]
    %v167 = vld [vmem:[#allocation7 + $0x18] sm:$0xf]
    %v168 = vld [vmem:[#allocation7 + $0x1c] sm:$0xf]
    %v169 = vld [vmem:[#allocation7 + $0x20] sm:$0xf]
    %v170 = vld [vmem:[#allocation7 + $0x24] sm:$0xf]
    %v171 = vld [vmem:[#allocation7 + $0x28] sm:$0xf]
    %v172 = vld [vmem:[#allocation7 + $0x2c] sm:$0xf]
    %v173 = vld [vmem:[#allocation7 + $0x30] sm:$0xf]
    %v174 = vld [vmem:[#allocation7 + $0x34] sm:$0xf]
    %v175 = vld [vmem:[#allocation7 + $0x38] sm:$0xf]
    %v176 = vld [vmem:[#allocation7 + $0x3c] sm:$0xf]
    %v177 = vld [vmem:[%s4] sm:$0x1]
    %v179 = vperm.slane %v177, 0
    %v197 = vunpack.c.l.b16 %v161
    %v198 = vunpack.c.l.b16 %v162
    %v199 = vunpack.c.l.b16 %v163
    %v200 = vunpack.c.l.b16 %v164
    %v201 = vunpack.c.l.b16 %v165
    %v202 = vunpack.c.l.b16 %v166
    %v203 = vunpack.c.l.b16 %v167
    %v204 = vunpack.c.l.b16 %v168
    %v205 = vunpack.c.l.b16 %v169
    %v206 = vunpack.c.l.b16 %v170
    %v207 = vunpack.c.l.b16 %v171
    %v208 = vunpack.c.l.b16 %v172
    %v209 = vunpack.c.l.b16 %v173
    %v210 = vunpack.c.l.b16 %v174
    %v211 = vunpack.c.l.b16 %v175
    %v212 = vunpack.c.l.b16 %v176
    %v213 = vpack.c.b16 %v198, %v197
    %v214 = vpack.c.b16 %v200, %v199
    %v215 = vpack.c.b16 %v202, %v201
    %v216 = vpack.c.b16 %v204, %v203
    %v217 = vpack.c.b16 %v206, %v205
    %v218 = vpack.c.b16 %v208, %v207
    %v219 = vpack.c.b16 %v210, %v209
    %v220 = vpack.c.b16 %v212, %v211
    %229 = vmatpush.bf16.msra.mxu0 %v220
    %230 = vmatpush.bf16.msra.mxu0 %v219
    %231 = vmatpush.bf16.msra.mxu0 %v218
    %232 = vmatpush.bf16.msra.mxu0 %v217
    %233 = vmatpush.bf16.msra.mxu0 %v216
    %234 = vmatpush.bf16.msra.mxu0 %v215
    %235 = vmatpush.bf16.msra.mxu0 %v214
    %236 = vmatpush.bf16.msra.mxu0 %v213
    %237 = vmatmul.bf16.gmra.mxu0 %v160
    %v238 = vpop.f32.mrf.mxu0
    %v239 = vadd.f32 %v179, %v238
    %v240 = vpop.f32.mrf.mxu0
    %v241 = vadd.f32 %v179, %v240
    %242 = vdwg.mxu0
    %243 = vst [vmem:[#allocation8] sm:$0xff] %v239
    %244 = vst [vmem:[#allocation8 + $0x8] sm:$0xff] %v241
    // Predicated region
    $region34: #{tpu_custom_call.1} parent=1 // pred_check
      _
    $region35: #{tpu_custom_call.1} parent=1 // pred_check_branch
      %246 = sbr.rel (0) target = $region37
    $region36: #{tpu_custom_call.1} parent=1 // pred_region
      %248 = vsyncadd [#allocation4], 0
      %s249 = sshll.u32 [#allocation8], 4
      %s250 = int_to_ptr.vmem [resolvable:$true] %s249
      %s251 = sshll.u32 %s5, 4
      %s252 = int_to_ptr.hbm [resolvable:$true] %s251
      %257 = dma.vmem_to_hbm [thread:$0]  %s250, 256, %s252, [#allocation4], 128, 128, 8
    $region37: #{tpu_custom_call.1} parent=1 // pred_fallthru
      _
    // Predicated region
    $region38: #{tpu_custom_call.1} parent=1 // pred_check
      _
    $region39: #{tpu_custom_call.1} parent=1 // pred_check_branch
      %259 = sbr.rel (0) target = $region41
    $region40: #{tpu_custom_call.1} parent=1 // pred_region
      %261 = dma.done [#allocation4], 256
    $region41: #{tpu_custom_call.1} parent=1 // pred_fallthru
      _
    %262 = vsyncpa [#allocation3], 1
    %263 = vsyncpa [#allocation6], 1
    %264 = vsyncpa [#allocation4], 1

</llo_original>
